<compile_context>
chip_gen: v5e
topology: v5e:2x2
jax: 0.10.0
libtpu: 0.0.40
codegen_flags: <defaults>
</compile_context>

<pallas_src>
import functools

import jax
import jax.numpy as jnp
from jax import lax
from jax.experimental import pallas as pl
from jax.experimental.pallas import tpu as pltpu


def _round_up(x, m):
    return ((x + m - 1) // m) * m


def _mlp_kernel(x_ref, w_ref, b_ref, o_ref, *, d_in, d_out, n_sub, act_dtype):
    """Fused 8-layer MLP on one batch tile.

    x_ref : (n_sub, sub_tile, D_in)   native row-major x sub-chunks
    w_ref : (8, HP, HP)               packed, zero-padded weights (PyTorch (out, in))
    b_ref : (8, HP, 1)                packed, zero-padded f32 biases
    o_ref : (n_sub, D_out, sub_tile)  transposed output; batch on lanes (dense stores)
    """
    w1 = w_ref[0][:, :d_in]                       # (HP, D_in): drop zero-pad columns

    def act(h):
        return h if act_dtype is None else h.astype(act_dtype)

    def lin(h, k):
        # (HP, HP) @ (HP, sub) -> (HP, sub); batch stays on lanes, f32 accumulate.
        return jnp.dot(w_ref[k], h, preferred_element_type=jnp.float32) + b_ref[k]

    def body(s, carry):
        x_blk = x_ref[s]                          # (sub_tile, D_in)
        # Layer 1: contract D_in of W1 against D_in of x (A @ B^T form) so the
        # batch lands on the lane axis without any host/kernel transpose of x.
        # dropout1(p=0.05) is eval-mode identity.
        h = lax.dot_general(w1, x_blk, (((1,), (1,)), ((), ())),
                            preferred_element_type=jnp.float32) + b_ref[0]
        h = act(jnp.maximum(h, 0.0))              # relu(dropout(linear1(x)))
        for k in range(1, 6):                     # linear2..linear6 + relu
            h = act(jnp.maximum(lin(h, k), 0.0))
        h = act(jnp.tanh(lin(h, 6)))              # linear7 + tanh
        h = lin(h, 7)                             # linear8 (rows >= d_out are zero pad)
        o_ref[s] = h[:d_out].astype(o_ref.dtype)  # lane-dense store of the real rows
        return carry

    lax.fori_loop(0, n_sub, body, 0, unroll=True)


def pack_params(params, *, compute_dtype=None):
    """Pack 8 (W, b) pairs (PyTorch layout: W (out,in), b (out,)) into
    a zero-padded (8, HP, HP) weight block and an (8, HP, 1) f32 bias block."""
    n = len(params)
    HP = max(max(w.shape) for w, _ in params)
    w_dtype = params[0][0].dtype if compute_dtype is None else compute_dtype
    Wp = jnp.zeros((n, HP, HP), w_dtype)
    Bp = jnp.zeros((n, HP, 1), jnp.float32)
    for k, (w, b) in enumerate(params):
        o, i = w.shape
        Wp = Wp.at[k, :o, :i].set(w.astype(w_dtype))
        Bp = Bp.at[k, :o, 0].set(b.astype(jnp.float32))
    return Wp, Bp


def nut_ann_forward(x, params, *, batch_tile=None, sub_tile=512,
                    compute_dtype=None, cast_activations=True):
    """Fused nutANN forward (eval-mode dropout).

    x:      (B, D_in) float32.
    params: list of 8 (W, b) pairs in PyTorch layout: W (out, in), b (out,).
    batch_tile: rows per grid step (multiple of 128).
    sub_tile:   rows per inner-loop sub-chunk (multiple of 128, <= batch_tile).
    compute_dtype: e.g. jnp.bfloat16 to run bf16 operands (f32 accumulation).
    cast_activations: re-cast activations to compute_dtype between layers
                      (recommended on v6e/v7x; use False on v5e).
    """
    B, D_in = x.shape
    assert len(params) == 8
    H = params[0][0].shape[0]
    D_out = params[-1][0].shape[0]

    # ---- batch tiling ------------------------------------------------------
    B_pad128 = _round_up(B, 128)
    if batch_tile is None:
        batch_tile = min(2048, B_pad128)
        # v7x: prefer >= 2 grid steps so the "parallel" axis can shard over
        # both TensorCores (only possible once the batch spans > 128 lanes).
        if batch_tile > 128 and B_pad128 // batch_tile < 2:
            batch_tile = max(128, _round_up((B_pad128 + 1) // 2, 128))
    assert batch_tile % 128 == 0, "batch_tile must be a multiple of 128 (lane axis)"

    # Inner sub-chunk: largest multiple of 128 <= sub_tile that divides batch_tile.
    sub_tile = max(128, (min(sub_tile, batch_tile) // 128) * 128)
    while batch_tile % sub_tile:
        sub_tile -= 128
    n_sub = batch_tile // sub_tile

    B_padded = _round_up(B, batch_tile)
    n_steps = B_padded // batch_tile
    total_chunks = B_padded // sub_tile

    # ---- inputs: native layout, tail-only pad, free reshape -----------------
    x_in = x if compute_dtype is None else x.astype(compute_dtype)
    if B_padded != B:
        # Tail pad only (no transpose / full HBM re-pass over x).  Padded rows
        # produce junk output columns that are sliced off below.
        x_in = jnp.pad(x_in, ((0, B_padded - B), (0, 0)))
    x_r = x_in.reshape(total_chunks, sub_tile, D_in)   # leading-dim split: no copy

    Wp, Bp = pack_params(params, compute_dtype=compute_dtype)

    in_specs = [
        pl.BlockSpec((n_sub, sub_tile, D_in), lambda i: (i, 0, 0)),  # x, streamed
        # NOTE: if xprof ever shows exposed x DMA at large tiles, sweep
        # pipeline_mode=pl.Buffered(3) on the x spec above.
        pl.BlockSpec(Wp.shape, lambda i: (0, 0, 0)),                 # weights, resident
        pl.BlockSpec(Bp.shape, lambda i: (0, 0, 0)),                 # biases, resident
    ]
    out_spec = pl.BlockSpec((n_sub, D_out, sub_tile), lambda i: (i, 0, 0))

    x_elem = jnp.dtype(x_in.dtype).itemsize
    w_bytes = (Wp.size * jnp.dtype(Wp.dtype).itemsize +
               Bp.size * jnp.dtype(Bp.dtype).itemsize)
    cost = pl.CostEstimate(
        flops=2 * B_padded * (D_in * H + 6 * H * H + H * D_out),
        transcendentals=B_padded * H,                 # tanh layer
        bytes_accessed=(B_padded * D_in * x_elem
                        + B_padded * D_out * jnp.dtype(x.dtype).itemsize
                        + w_bytes),
    )

    act_dtype = compute_dtype if (compute_dtype is not None and cast_activations) else None
    kernel = functools.partial(_mlp_kernel, d_in=D_in, d_out=D_out,
                               n_sub=n_sub, act_dtype=act_dtype)

    out3 = pl.pallas_call(
        kernel,
        out_shape=jax.ShapeDtypeStruct((total_chunks, D_out, sub_tile), x.dtype),
        grid_spec=pltpu.PrefetchScalarGridSpec(
            num_scalar_prefetch=0,
            grid=(n_steps,),
            in_specs=in_specs,
            out_specs=out_spec,
        ),
        compiler_params=pltpu.CompilerParams(
            dimension_semantics=("parallel",)),
        cost_estimate=cost,
    )(x_r, Wp, Bp)

    # (chunks, D_out, sub) -> (B, D_out); tiny (4*B elements) wrapper reshuffle.
    out = jnp.transpose(out3, (0, 2, 1)).reshape(B_padded, D_out)
    return out[:B]


def init_params(key, D_in, H, D_out):
    """Deterministic init mimicking torch.nn.Linear (uniform +/- 1/sqrt(fan_in)).
    Weights in PyTorch layout: W (out_features, in_features), b (out,)."""
    dims = [(D_in, H)] + [(H, H)] * 6 + [(H, D_out)]
    params = []
    for (fan_in, fan_out) in dims:
        key, kw, kb = jax.random.split(key, 3)
        bound = 1.0 / jnp.sqrt(fan_in)
        w = jax.random.uniform(kw, (fan_out, fan_in), jnp.float32, -bound, bound)
        b = jax.random.uniform(kb, (fan_out,), jnp.float32, -bound, bound)
        params.append((w, b))
    return params


def reference_forward(x, params):
    """Pure-JAX reference (PyTorch semantics, eval-mode dropout)."""
    h = x
    for idx, (w, b) in enumerate(params):
        h = jnp.dot(h, w.T, precision=jax.lax.Precision.HIGHEST) + b
        if idx < 6:
            h = jnp.maximum(h, 0.0)
        elif idx == 6:
            h = jnp.tanh(h)
    return h


if __name__ == "__main__":
    key = jax.random.PRNGKey(0)
    B, D_in, H, D_out = 8, 16, 32, 4

    key, kx = jax.random.split(key)
    x = jax.random.normal(kx, (B, D_in), jnp.float32)
    params = init_params(key, D_in, H, D_out)

    out = jax.block_until_ready(nut_ann_forward(x, params))
    ref = reference_forward(x, params)

    assert out.shape == (B, D_out)
    err = float(jnp.max(jnp.abs(out - ref)))
    assert jnp.allclose(out, ref, atol=2e-4, rtol=2e-4), f"mismatch vs reference: {err}"

    print("KERNEL_OK")
</pallas_src>

<mosaic_0001>
module attributes {stable_mosaic.version = 11 : i64} {
  func.func @_mlp_kernel(%arg0: i32, %arg1: memref<1x128x16xf32, #tpu.memory_space<vmem>>, %arg2: memref<8x32x32xf32, #tpu.memory_space<vmem>>, %arg3: memref<8x32x1xf32, #tpu.memory_space<vmem>>, %arg4: memref<1x4x128xf32, #tpu.memory_space<vmem>>) attributes {dimension_semantics = [#tpu.dimension_semantics<parallel>], iteration_bounds = array<i64: 1>, scalar_prefetch = 0 : i64, scratch_operands = 0 : i64, tpu.core_type = #tpu.core_type<tc>, window_params = [{transform_indices = @transform_0, window_bounds = array<i64: 1, 128, 16>}, {pipeline_mode = #tpu.pipeline_mode<synchronous>, transform_indices = @transform_1, window_bounds = array<i64: 8, 32, 32>}, {pipeline_mode = #tpu.pipeline_mode<synchronous>, transform_indices = @transform_2, window_bounds = array<i64: 8, 32, 1>}, {transform_indices = @transform_3, window_bounds = array<i64: 1, 4, 128>}]} {
    %c0 = arith.constant 0 : index
    %c0_0 = arith.constant 0 : index
    %c0_1 = arith.constant 0 : index
    %0 = vector.load %arg2[%c0, %c0_0, %c0_1] : memref<8x32x32xf32, #tpu.memory_space<vmem>>, vector<1x32x32xf32>
    %1 = vector.shape_cast %0 : vector<1x32x32xf32> to vector<32x32xf32>
    %2 = vector.extract_strided_slice %1 {offsets = [0, 0], sizes = [32, 16], strides = [1, 1]} : vector<32x32xf32> to vector<32x16xf32>
    %c0_i32 = arith.constant 0 : i32
    %3 = arith.index_cast %c0_i32 : i32 to index
    %c0_2 = arith.constant 0 : index
    %c0_3 = arith.constant 0 : index
    %4 = vector.load %arg1[%3, %c0_2, %c0_3] : memref<1x128x16xf32, #tpu.memory_space<vmem>>, vector<1x128x16xf32>
    %5 = vector.shape_cast %4 : vector<1x128x16xf32> to vector<128x16xf32>
    %cst = arith.constant dense<0.000000e+00> : vector<32x128xf32>
    %6 = tpu.matmul %2, %5, %cst {dimension_numbers = #tpu.dot_dimension_numbers<[1], [1], [0], [0], [0, 0, 1, 0], [], []>} : vector<32x16xf32>, vector<128x16xf32>, vector<32x128xf32> -> vector<32x128xf32>
    %c0_4 = arith.constant 0 : index
    %c0_5 = arith.constant 0 : index
    %c0_6 = arith.constant 0 : index
    %7 = vector.load %arg3[%c0_4, %c0_5, %c0_6] : memref<8x32x1xf32, #tpu.memory_space<vmem>>, vector<1x32x1xf32>
    %8 = vector.shape_cast %7 : vector<1x32x1xf32> to vector<32x1xf32>
    %9 = vector.broadcast %8 : vector<32x1xf32> to vector<32x128xf32>
    %10 = arith.addf %6, %9 : vector<32x128xf32>
    %cst_7 = arith.constant 0.000000e+00 : f32
    %11 = vector.broadcast %cst_7 : f32 to vector<32x128xf32>
    %12 = arith.maximumf %10, %11 : vector<32x128xf32>
    %c1 = arith.constant 1 : index
    %c0_8 = arith.constant 0 : index
    %c0_9 = arith.constant 0 : index
    %13 = vector.load %arg2[%c1, %c0_8, %c0_9] : memref<8x32x32xf32, #tpu.memory_space<vmem>>, vector<1x32x32xf32>
    %14 = vector.shape_cast %13 : vector<1x32x32xf32> to vector<32x32xf32>
    %cst_10 = arith.constant dense<0.000000e+00> : vector<32x128xf32>
    %15 = tpu.matmul %14, %12, %cst_10 {dimension_numbers = #tpu.dot_dimension_numbers<[1], [0], [0], [1], [0, 0, 1, 1], [], []>} : vector<32x32xf32>, vector<32x128xf32>, vector<32x128xf32> -> vector<32x128xf32>
    %c1_11 = arith.constant 1 : index
    %c0_12 = arith.constant 0 : index
    %c0_13 = arith.constant 0 : index
    %16 = vector.load %arg3[%c1_11, %c0_12, %c0_13] : memref<8x32x1xf32, #tpu.memory_space<vmem>>, vector<1x32x1xf32>
    %17 = vector.shape_cast %16 : vector<1x32x1xf32> to vector<32x1xf32>
    %18 = vector.broadcast %17 : vector<32x1xf32> to vector<32x128xf32>
    %19 = arith.addf %15, %18 : vector<32x128xf32>
    %cst_14 = arith.constant 0.000000e+00 : f32
    %20 = vector.broadcast %cst_14 : f32 to vector<32x128xf32>
    %21 = arith.maximumf %19, %20 : vector<32x128xf32>
    %c2 = arith.constant 2 : index
    %c0_15 = arith.constant 0 : index
    %c0_16 = arith.constant 0 : index
    %22 = vector.load %arg2[%c2, %c0_15, %c0_16] : memref<8x32x32xf32, #tpu.memory_space<vmem>>, vector<1x32x32xf32>
    %23 = vector.shape_cast %22 : vector<1x32x32xf32> to vector<32x32xf32>
    %cst_17 = arith.constant dense<0.000000e+00> : vector<32x128xf32>
    %24 = tpu.matmul %23, %21, %cst_17 {dimension_numbers = #tpu.dot_dimension_numbers<[1], [0], [0], [1], [0, 0, 1, 1], [], []>} : vector<32x32xf32>, vector<32x128xf32>, vector<32x128xf32> -> vector<32x128xf32>
    %c2_18 = arith.constant 2 : index
    %c0_19 = arith.constant 0 : index
    %c0_20 = arith.constant 0 : index
    %25 = vector.load %arg3[%c2_18, %c0_19, %c0_20] : memref<8x32x1xf32, #tpu.memory_space<vmem>>, vector<1x32x1xf32>
    %26 = vector.shape_cast %25 : vector<1x32x1xf32> to vector<32x1xf32>
    %27 = vector.broadcast %26 : vector<32x1xf32> to vector<32x128xf32>
    %28 = arith.addf %24, %27 : vector<32x128xf32>
    %cst_21 = arith.constant 0.000000e+00 : f32
    %29 = vector.broadcast %cst_21 : f32 to vector<32x128xf32>
    %30 = arith.maximumf %28, %29 : vector<32x128xf32>
    %c3 = arith.constant 3 : index
    %c0_22 = arith.constant 0 : index
    %c0_23 = arith.constant 0 : index
    %31 = vector.load %arg2[%c3, %c0_22, %c0_23] : memref<8x32x32xf32, #tpu.memory_space<vmem>>, vector<1x32x32xf32>
    %32 = vector.shape_cast %31 : vector<1x32x32xf32> to vector<32x32xf32>
    %cst_24 = arith.constant dense<0.000000e+00> : vector<32x128xf32>
    %33 = tpu.matmul %32, %30, %cst_24 {dimension_numbers = #tpu.dot_dimension_numbers<[1], [0], [0], [1], [0, 0, 1, 1], [], []>} : vector<32x32xf32>, vector<32x128xf32>, vector<32x128xf32> -> vector<32x128xf32>
    %c3_25 = arith.constant 3 : index
    %c0_26 = arith.constant 0 : index
    %c0_27 = arith.constant 0 : index
    %34 = vector.load %arg3[%c3_25, %c0_26, %c0_27] : memref<8x32x1xf32, #tpu.memory_space<vmem>>, vector<1x32x1xf32>
    %35 = vector.shape_cast %34 : vector<1x32x1xf32> to vector<32x1xf32>
    %36 = vector.broadcast %35 : vector<32x1xf32> to vector<32x128xf32>
    %37 = arith.addf %33, %36 : vector<32x128xf32>
    %cst_28 = arith.constant 0.000000e+00 : f32
    %38 = vector.broadcast %cst_28 : f32 to vector<32x128xf32>
    %39 = arith.maximumf %37, %38 : vector<32x128xf32>
    %c4 = arith.constant 4 : index
    %c0_29 = arith.constant 0 : index
    %c0_30 = arith.constant 0 : index
    %40 = vector.load %arg2[%c4, %c0_29, %c0_30] : memref<8x32x32xf32, #tpu.memory_space<vmem>>, vector<1x32x32xf32>
    %41 = vector.shape_cast %40 : vector<1x32x32xf32> to vector<32x32xf32>
    %cst_31 = arith.constant dense<0.000000e+00> : vector<32x128xf32>
    %42 = tpu.matmul %41, %39, %cst_31 {dimension_numbers = #tpu.dot_dimension_numbers<[1], [0], [0], [1], [0, 0, 1, 1], [], []>} : vector<32x32xf32>, vector<32x128xf32>, vector<32x128xf32> -> vector<32x128xf32>
    %c4_32 = arith.constant 4 : index
    %c0_33 = arith.constant 0 : index
    %c0_34 = arith.constant 0 : index
    %43 = vector.load %arg3[%c4_32, %c0_33, %c0_34] : memref<8x32x1xf32, #tpu.memory_space<vmem>>, vector<1x32x1xf32>
    %44 = vector.shape_cast %43 : vector<1x32x1xf32> to vector<32x1xf32>
    %45 = vector.broadcast %44 : vector<32x1xf32> to vector<32x128xf32>
    %46 = arith.addf %42, %45 : vector<32x128xf32>
    %cst_35 = arith.constant 0.000000e+00 : f32
    %47 = vector.broadcast %cst_35 : f32 to vector<32x128xf32>
    %48 = arith.maximumf %46, %47 : vector<32x128xf32>
    %c5 = arith.constant 5 : index
    %c0_36 = arith.constant 0 : index
    %c0_37 = arith.constant 0 : index
    %49 = vector.load %arg2[%c5, %c0_36, %c0_37] : memref<8x32x32xf32, #tpu.memory_space<vmem>>, vector<1x32x32xf32>
    %50 = vector.shape_cast %49 : vector<1x32x32xf32> to vector<32x32xf32>
    %cst_38 = arith.constant dense<0.000000e+00> : vector<32x128xf32>
    %51 = tpu.matmul %50, %48, %cst_38 {dimension_numbers = #tpu.dot_dimension_numbers<[1], [0], [0], [1], [0, 0, 1, 1], [], []>} : vector<32x32xf32>, vector<32x128xf32>, vector<32x128xf32> -> vector<32x128xf32>
    %c5_39 = arith.constant 5 : index
    %c0_40 = arith.constant 0 : index
    %c0_41 = arith.constant 0 : index
    %52 = vector.load %arg3[%c5_39, %c0_40, %c0_41] : memref<8x32x1xf32, #tpu.memory_space<vmem>>, vector<1x32x1xf32>
    %53 = vector.shape_cast %52 : vector<1x32x1xf32> to vector<32x1xf32>
    %54 = vector.broadcast %53 : vector<32x1xf32> to vector<32x128xf32>
    %55 = arith.addf %51, %54 : vector<32x128xf32>
    %cst_42 = arith.constant 0.000000e+00 : f32
    %56 = vector.broadcast %cst_42 : f32 to vector<32x128xf32>
    %57 = arith.maximumf %55, %56 : vector<32x128xf32>
    %c6 = arith.constant 6 : index
    %c0_43 = arith.constant 0 : index
    %c0_44 = arith.constant 0 : index
    %58 = vector.load %arg2[%c6, %c0_43, %c0_44] : memref<8x32x32xf32, #tpu.memory_space<vmem>>, vector<1x32x32xf32>
    %59 = vector.shape_cast %58 : vector<1x32x32xf32> to vector<32x32xf32>
    %cst_45 = arith.constant dense<0.000000e+00> : vector<32x128xf32>
    %60 = tpu.matmul %59, %57, %cst_45 {dimension_numbers = #tpu.dot_dimension_numbers<[1], [0], [0], [1], [0, 0, 1, 1], [], []>} : vector<32x32xf32>, vector<32x128xf32>, vector<32x128xf32> -> vector<32x128xf32>
    %c6_46 = arith.constant 6 : index
    %c0_47 = arith.constant 0 : index
    %c0_48 = arith.constant 0 : index
    %61 = vector.load %arg3[%c6_46, %c0_47, %c0_48] : memref<8x32x1xf32, #tpu.memory_space<vmem>>, vector<1x32x1xf32>
    %62 = vector.shape_cast %61 : vector<1x32x1xf32> to vector<32x1xf32>
    %63 = vector.broadcast %62 : vector<32x1xf32> to vector<32x128xf32>
    %64 = arith.addf %60, %63 : vector<32x128xf32>
    %65 = math.tanh %64 : vector<32x128xf32>
    %c7 = arith.constant 7 : index
    %c0_49 = arith.constant 0 : index
    %c0_50 = arith.constant 0 : index
    %66 = vector.load %arg2[%c7, %c0_49, %c0_50] : memref<8x32x32xf32, #tpu.memory_space<vmem>>, vector<1x32x32xf32>
    %67 = vector.shape_cast %66 : vector<1x32x32xf32> to vector<32x32xf32>
    %cst_51 = arith.constant dense<0.000000e+00> : vector<32x128xf32>
    %68 = tpu.matmul %67, %65, %cst_51 {dimension_numbers = #tpu.dot_dimension_numbers<[1], [0], [0], [1], [0, 0, 1, 1], [], []>} : vector<32x32xf32>, vector<32x128xf32>, vector<32x128xf32> -> vector<32x128xf32>
    %c7_52 = arith.constant 7 : index
    %c0_53 = arith.constant 0 : index
    %c0_54 = arith.constant 0 : index
    %69 = vector.load %arg3[%c7_52, %c0_53, %c0_54] : memref<8x32x1xf32, #tpu.memory_space<vmem>>, vector<1x32x1xf32>
    %70 = vector.shape_cast %69 : vector<1x32x1xf32> to vector<32x1xf32>
    %71 = vector.broadcast %70 : vector<32x1xf32> to vector<32x128xf32>
    %72 = arith.addf %68, %71 : vector<32x128xf32>
    %73 = vector.extract_strided_slice %72 {offsets = [0, 0], sizes = [4, 128], strides = [1, 1]} : vector<32x128xf32> to vector<4x128xf32>
    %74 = arith.index_cast %c0_i32 : i32 to index
    %c0_55 = arith.constant 0 : index
    %c0_56 = arith.constant 0 : index
    %75 = vector.load %arg4[%74, %c0_55, %c0_56] : memref<1x4x128xf32, #tpu.memory_space<vmem>>, vector<1x4x128xf32>
    %76 = vector.shape_cast %75 : vector<1x4x128xf32> to vector<4x128xf32>
    %77 = vector.shape_cast %73 : vector<4x128xf32> to vector<1x4x128xf32>
    tpu.vector_store %arg4[%74, %c0_55, %c0_56], %77 {strides = array<i32>} : memref<1x4x128xf32, #tpu.memory_space<vmem>>, vector<1x4x128xf32>,
    %c1_i32 = arith.constant 1 : i32
    return
  }
  func.func @transform_0(%arg0: i32) -> (i32, i32, i32) {
    %c0_i32 = arith.constant 0 : i32
    %c0_i32_0 = arith.constant 0 : i32
    %c0_i32_1 = arith.constant 0 : i32
    return %arg0, %c0_i32, %c0_i32_0 : i32, i32, i32
  }
  func.func @transform_1(%arg0: i32) -> (i32, i32, i32) {
    %c0_i32 = arith.constant 0 : i32
    %c0_i32_0 = arith.constant 0 : i32
    %c0_i32_1 = arith.constant 0 : i32
    %c0_i32_2 = arith.constant 0 : i32
    return %c0_i32, %c0_i32_0, %c0_i32_1 : i32, i32, i32
  }
  func.func @transform_2(%arg0: i32) -> (i32, i32, i32) {
    %c0_i32 = arith.constant 0 : i32
    %c0_i32_0 = arith.constant 0 : i32
    %c0_i32_1 = arith.constant 0 : i32
    %c0_i32_2 = arith.constant 0 : i32
    return %c0_i32, %c0_i32_0, %c0_i32_1 : i32, i32, i32
  }
  func.func @transform_3(%arg0: i32) -> (i32, i32, i32) {
    %c0_i32 = arith.constant 0 : i32
    %c0_i32_0 = arith.constant 0 : i32
    %c0_i32_1 = arith.constant 0 : i32
    return %arg0, %c0_i32, %c0_i32_0 : i32, i32, i32
  }
}

</mosaic_0001>

<llo_original>
// kernel: tpu_custom_call.1
$region0: #{tpu_custom_call.1}
  #allocation0 [shape = 'u32[]', space=smem, size = 0x4, offset = 0x4, fixed_abs, tag = 'smem constant byte address 0x4 - core index']
  #allocation1 [shape = 'u32[72,128]{1,0:T(1,128)}', space=vmem, size = 0x9000, scoped, tag = 'internal scratch']
  %s0 = inlined_call_operand.vmem [shape: f32[1,128,16], index: 0, kind: input, shape index: {}]
  %s1 = inlined_call_operand.vmem [shape: f32[8,32,32], index: 1, kind: input, shape index: {}]
  %s2 = inlined_call_operand.vmem [shape: f32[8,32,1], index: 2, kind: input, shape index: {}]
  %s3 = inlined_call_operand.hbm [shape: f32[1,4,128], index: 3, kind: output, shape index: {}]
  %s4 = sld [smem:[#allocation0]]
  $region22: #{tpu_custom_call.1} parent=0
    _
  %s6 = ssub.s32 1, %s4
  %s7 = scalar_select 0, %s6, %s4
  $region1: #{tpu_custom_call.1} parent=0
    #allocation2 [shape = 'u8[2048]{0}', space=vmem, size = 0x800, scoped, tag = 'output window, operand 0, single buffered']
    #allocation3 [shape = 's32[1]{0}', space=sflag, size = 0x4, scoped, tag = 'scoped memory for tpu_custom_call.1']
    %8 = vsyncpa [#allocation3], 0
    // Predicated region
    $region2: #{tpu_custom_call.1} parent=1 // pred_check
      _
    $region3: #{tpu_custom_call.1} parent=1 // pred_check_branch
      %10 = sbr.rel (0) target = $region5
    $region4: #{tpu_custom_call.1} parent=1 // pred_region
      _
    $region5: #{tpu_custom_call.1} parent=1 // pred_fallthru
      _
    // Predicated region
    $region6: #{tpu_custom_call.1} parent=1 // pred_check
      _
    $region7: #{tpu_custom_call.1} parent=1 // pred_check_branch
      %12 = sbr.rel (0) target = $region9
    $region8: #{tpu_custom_call.1} parent=1 // pred_region
      _
    $region9: #{tpu_custom_call.1} parent=1 // pred_fallthru
      _
    // Predicated region
    $region10: #{tpu_custom_call.1} parent=1 // pred_check
      _
    $region11: #{tpu_custom_call.1} parent=1 // pred_check_branch
      %14 = sbr.rel (0) target = $region13
    $region12: #{tpu_custom_call.1} parent=1 // pred_region
      _
    $region13: #{tpu_custom_call.1} parent=1 // pred_fallthru
      _
    %v15 = vld [vmem:[%s1] sm:$0xff]
    %v16 = vld [vmem:[%s1 + $0x8] sm:$0xff]
    %v17 = vld [vmem:[%s1 + $0x10] sm:$0xff]
    %v18 = vld [vmem:[%s1 + $0x18] sm:$0xff]
    %v19 = vld [vmem:[%s0] sm:$0xff]
    %v20 = vld [vmem:[%s0 + $0x8] sm:$0xff]
    %v21 = vld [vmem:[%s0 + $0x10] sm:$0xff]
    %v22 = vld [vmem:[%s0 + $0x18] sm:$0xff]
    %v23 = vld [vmem:[%s0 + $0x20] sm:$0xff]
    %v24 = vld [vmem:[%s0 + $0x28] sm:$0xff]
    %v25 = vld [vmem:[%s0 + $0x30] sm:$0xff]
    %v26 = vld [vmem:[%s0 + $0x38] sm:$0xff]
    %v27 = vld [vmem:[%s0 + $0x40] sm:$0xff]
    %v28 = vld [vmem:[%s0 + $0x48] sm:$0xff]
    %v29 = vld [vmem:[%s0 + $0x50] sm:$0xff]
    %v30 = vld [vmem:[%s0 + $0x58] sm:$0xff]
    %v31 = vld [vmem:[%s0 + $0x60] sm:$0xff]
    %v32 = vld [vmem:[%s0 + $0x68] sm:$0xff]
    %v33 = vld [vmem:[%s0 + $0x70] sm:$0xff]
    %v34 = vld [vmem:[%s0 + $0x78] sm:$0xff]
    %v35 = vld [vmem:[%s2] sm:$0xff]
    %v36 = vld [vmem:[%s2 + $0x8] sm:$0xff]
    %v37 = vld [vmem:[%s2 + $0x10] sm:$0xff]
    %v38 = vld [vmem:[%s2 + $0x18] sm:$0xff]
    %40 = vset.pattern.permute.xlu0 0
    %41 = vperm.xlu0 %40, %v35
    %v42 = vpop.permute.xlu0 %41
    %45 = vset.pattern.permute.xlu0 0
    %46 = vperm.xlu0 %45, %v36
    %v47 = vpop.permute.xlu0 %46
    %50 = vset.pattern.permute.xlu0 0
    %51 = vperm.xlu0 %50, %v37
    %v52 = vpop.permute.xlu0 %51
    %55 = vset.pattern.permute.xlu0 0
    %56 = vperm.xlu0 %55, %v38
    %v57 = vpop.permute.xlu0 %56
    %vm59 = vcmask 130048
    %v61 = vsel %vm59, %v15, 0
    %v64 = vsel %vm59, %v16, 0
    %v67 = vsel %vm59, %v17, 0
    %v70 = vsel %vm59, %v18, 0
    %v73 = vsel %vm59, %v19, 0
    %v76 = vsel %vm59, %v20, 0
    %v79 = vsel %vm59, %v21, 0
    %v82 = vsel %vm59, %v22, 0
    %v85 = vsel %vm59, %v23, 0
    %v88 = vsel %vm59, %v24, 0
    %v91 = vsel %vm59, %v25, 0
    %v94 = vsel %vm59, %v26, 0
    %v97 = vsel %vm59, %v27, 0
    %v100 = vsel %vm59, %v28, 0
    %v103 = vsel %vm59, %v29, 0
    %v106 = vsel %vm59, %v30, 0
    %v109 = vsel %vm59, %v31, 0
    %v112 = vsel %vm59, %v32, 0
    %v115 = vsel %vm59, %v33, 0
    %v118 = vsel %vm59, %v34, 0
    %120 = vmatpush.xpose.msra.mxu0 %v118
    %121 = vmatpush.xpose.msra.mxu0 %v115
    %122 = vmatpush.xpose.msra.mxu0 %v112
    %123 = vmatpush.xpose.msra.mxu0 %v109
    %124 = vmatpush.xpose.msra.mxu0 %v106
    %125 = vmatpush.xpose.msra.mxu0 %v103
    %126 = vmatpush.xpose.msra.mxu0 %v100
    %127 = vmatpush.xpose.msra.mxu0 %v97
    %128 = vmatpush.xpose.msra.mxu0 %v94
    %129 = vmatpush.xpose.msra.mxu0 %v91
    %130 = vmatpush.xpose.msra.mxu0 %v88
    %131 = vmatpush.xpose.msra.mxu0 %v85
    %132 = vmatpush.xpose.msra.mxu0 %v82
    %133 = vmatpush.xpose.msra.mxu0 %v79
    %134 = vmatpush.xpose.msra.mxu0 %v76
    %135 = vmatpush.xpose.msra.mxu0 %v73
    %136 = vmatmul.f32.gmra.mxu0 %v61
    %v137 = vpop.f32.mrf.mxu0
    %v138 = vadd.f32 %v42, %v137
    %139 = vmatmul.f32.gmra.mxu0 %v64
    %v140 = vpop.f32.mrf.mxu0
    %v141 = vadd.f32 %v47, %v140
    %142 = vmatmul.f32.gmra.mxu0 %v67
    %v143 = vpop.f32.mrf.mxu0
    %v144 = vadd.f32 %v52, %v143
    %145 = vmatmul.f32.gmra.mxu0 %v70
    %v146 = vpop.f32.mrf.mxu0
    %v147 = vadd.f32 %v57, %v146
    %148 = vdwg.mxu0
    %v149 = vmax.f32 %v138, 0.0
    %v150 = vmax.f32 %v141, 0.0
    %v151 = vmax.f32 %v144, 0.0
    %v152 = vmax.f32 %v147, 0.0
    %s153 = scalar_lea.vmem %s1, 32
    %v154 = vld [vmem:[%s153] sm:$0xff]
    %v155 = vld [vmem:[%s153 + $0x8] sm:$0xff]
    %v156 = vld [vmem:[%s153 + $0x10] sm:$0xff]
    %v157 = vld [vmem:[%s153 + $0x18] sm:$0xff]
    %s158 = scalar_lea.vmem %s2, 32
    %v159 = vld [vmem:[%s158] sm:$0xff]
    %v160 = vld [vmem:[%s158 + $0x8] sm:$0xff]
    %v161 = vld [vmem:[%s158 + $0x10] sm:$0xff]
    %v162 = vld [vmem:[%s158 + $0x18] sm:$0xff]
    %164 = vset.pattern.permute.xlu0 0
    %165 = vperm.xlu0 %164, %v159
    %v166 = vpop.permute.xlu0 %165
    %169 = vset.pattern.permute.xlu0 0
    %170 = vperm.xlu0 %169, %v160
    %v171 = vpop.permute.xlu0 %170
    %174 = vset.pattern.permute.xlu0 0
    %175 = vperm.xlu0 %174, %v161
    %v176 = vpop.permute.xlu0 %175
    %179 = vset.pattern.permute.xlu0 0
    %180 = vperm.xlu0 %179, %v162
    %v181 = vpop.permute.xlu0 %180
    %vm183 = vcmask 261120
    %v185 = vsel %vm183, %v154, 0
    %v188 = vsel %vm183, %v155, 0
    %v191 = vsel %vm183, %v156, 0
    %v194 = vsel %vm183, %v157, 0
    %196 = vmatpush.msra.mxu0 0.0
    %197 = vmatpush.msra.mxu0 0.0
    %198 = vmatpush.msra.mxu0 0.0
    %199 = vmatpush.msra.mxu0 0.0
    %200 = vmatpush.msra.mxu0 0.0
    %201 = vmatpush.msra.mxu0 0.0
    %202 = vmatpush.msra.mxu0 0.0
    %203 = vmatpush.msra.mxu0 0.0
    %204 = vmatpush.msra.mxu0 0.0
    %205 = vmatpush.msra.mxu0 0.0
    %206 = vmatpush.msra.mxu0 0.0
    %207 = vmatpush.msra.mxu0 0.0
    %208 = vmatpush.msra.mxu0 %v152
    %209 = vmatpush.msra.mxu0 %v151
    %210 = vmatpush.msra.mxu0 %v150
    %211 = vmatpush.msra.mxu0 %v149
    %212 = vmatmul.f32.gmra.mxu0 %v185
    %v213 = vpop.f32.mrf.mxu0
    %v214 = vadd.f32 %v166, %v213
    %215 = vmatmul.f32.gmra.mxu0 %v188
    %v216 = vpop.f32.mrf.mxu0
    %v217 = vadd.f32 %v171, %v216
    %218 = vmatmul.f32.gmra.mxu0 %v191
    %v219 = vpop.f32.mrf.mxu0
    %v220 = vadd.f32 %v176, %v219
    %221 = vmatmul.f32.gmra.mxu0 %v194
    %v222 = vpop.f32.mrf.mxu0
    %v223 = vadd.f32 %v181, %v222
    %224 = vdwg.mxu0
    %v225 = vmax.f32 %v214, 0.0
    %v226 = vmax.f32 %v217, 0.0
    %v227 = vmax.f32 %v220, 0.0
    %v228 = vmax.f32 %v223, 0.0
    %s229 = scalar_lea.vmem %s1, 64
    %v230 = vld [vmem:[%s229] sm:$0xff]
    %v231 = vld [vmem:[%s229 + $0x8] sm:$0xff]
    %v232 = vld [vmem:[%s229 + $0x10] sm:$0xff]
    %v233 = vld [vmem:[%s229 + $0x18] sm:$0xff]
    %s234 = scalar_lea.vmem %s2, 64
    %v235 = vld [vmem:[%s234] sm:$0xff]
    %v236 = vld [vmem:[%s234 + $0x8] sm:$0xff]
    %v237 = vld [vmem:[%s234 + $0x10] sm:$0xff]
    %v238 = vld [vmem:[%s234 + $0x18] sm:$0xff]
    %240 = vset.pattern.permute.xlu0 0
    %241 = vperm.xlu0 %240, %v235
    %v242 = vpop.permute.xlu0 %241
    %245 = vset.pattern.permute.xlu0 0
    %246 = vperm.xlu0 %245, %v236
    %v247 = vpop.permute.xlu0 %246
    %250 = vset.pattern.permute.xlu0 0
    %251 = vperm.xlu0 %250, %v237
    %v252 = vpop.permute.xlu0 %251
    %255 = vset.pattern.permute.xlu0 0
    %256 = vperm.xlu0 %255, %v238
    %v257 = vpop.permute.xlu0 %256
    %v260 = vsel %vm183, %v230, 0
    %v263 = vsel %vm183, %v231, 0
    %v266 = vsel %vm183, %v232, 0
    %v269 = vsel %vm183, %v233, 0
    %271 = vmatpush.msra.mxu0 0.0
    %272 = vmatpush.msra.mxu0 0.0
    %273 = vmatpush.msra.mxu0 0.0
    %274 = vmatpush.msra.mxu0 0.0
    %275 = vmatpush.msra.mxu0 0.0
    %276 = vmatpush.msra.mxu0 0.0
    %277 = vmatpush.msra.mxu0 0.0
    %278 = vmatpush.msra.mxu0 0.0
    %279 = vmatpush.msra.mxu0 0.0
    %280 = vmatpush.msra.mxu0 0.0
    %281 = vmatpush.msra.mxu0 0.0
    %282 = vmatpush.msra.mxu0 0.0
    %283 = vmatpush.msra.mxu0 %v228
    %284 = vmatpush.msra.mxu0 %v227
    %285 = vmatpush.msra.mxu0 %v226
    %286 = vmatpush.msra.mxu0 %v225
    %287 = vmatmul.f32.gmra.mxu0 %v260
    %v288 = vpop.f32.mrf.mxu0
    %v289 = vadd.f32 %v242, %v288
    %290 = vmatmul.f32.gmra.mxu0 %v263
    %v291 = vpop.f32.mrf.mxu0
    %v292 = vadd.f32 %v247, %v291
    %293 = vmatmul.f32.gmra.mxu0 %v266
    %v294 = vpop.f32.mrf.mxu0
    %v295 = vadd.f32 %v252, %v294
    %296 = vmatmul.f32.gmra.mxu0 %v269
    %v297 = vpop.f32.mrf.mxu0
    %v298 = vadd.f32 %v257, %v297
    %299 = vdwg.mxu0
    %v300 = vmax.f32 %v289, 0.0
    %v301 = vmax.f32 %v292, 0.0
    %v302 = vmax.f32 %v295, 0.0
    %v303 = vmax.f32 %v298, 0.0
    %s304 = scalar_lea.vmem %s1, 96
    %v305 = vld [vmem:[%s304] sm:$0xff]
    %v306 = vld [vmem:[%s304 + $0x8] sm:$0xff]
    %v307 = vld [vmem:[%s304 + $0x10] sm:$0xff]
    %v308 = vld [vmem:[%s304 + $0x18] sm:$0xff]
    %s309 = scalar_lea.vmem %s2, 96
    %v310 = vld [vmem:[%s309] sm:$0xff]
    %v311 = vld [vmem:[%s309 + $0x8] sm:$0xff]
    %v312 = vld [vmem:[%s309 + $0x10] sm:$0xff]
    %v313 = vld [vmem:[%s309 + $0x18] sm:$0xff]
    %315 = vset.pattern.permute.xlu0 0
    %316 = vperm.xlu0 %315, %v310
    %v317 = vpop.permute.xlu0 %316
    %320 = vset.pattern.permute.xlu0 0
    %321 = vperm.xlu0 %320, %v311
    %v322 = vpop.permute.xlu0 %321
    %325 = vset.pattern.permute.xlu0 0
    %326 = vperm.xlu0 %325, %v312
    %v327 = vpop.permute.xlu0 %326
    %330 = vset.pattern.permute.xlu0 0
    %331 = vperm.xlu0 %330, %v313
    %v332 = vpop.permute.xlu0 %331
    %v335 = vsel %vm183, %v305, 0
    %v338 = vsel %vm183, %v306, 0
    %v341 = vsel %vm183, %v307, 0
    %v344 = vsel %vm183, %v308, 0
    %346 = vmatpush.msra.mxu0 0.0
    %347 = vmatpush.msra.mxu0 0.0
    %348 = vmatpush.msra.mxu0 0.0
    %349 = vmatpush.msra.mxu0 0.0
    %350 = vmatpush.msra.mxu0 0.0
    %351 = vmatpush.msra.mxu0 0.0
    %352 = vmatpush.msra.mxu0 0.0
    %353 = vmatpush.msra.mxu0 0.0
    %354 = vmatpush.msra.mxu0 0.0
    %355 = vmatpush.msra.mxu0 0.0
    %356 = vmatpush.msra.mxu0 0.0
    %357 = vmatpush.msra.mxu0 0.0
    %358 = vmatpush.msra.mxu0 %v303
    %359 = vmatpush.msra.mxu0 %v302
    %360 = vmatpush.msra.mxu0 %v301
    %361 = vmatpush.msra.mxu0 %v300
    %362 = vmatmul.f32.gmra.mxu0 %v335
    %v363 = vpop.f32.mrf.mxu0
    %v364 = vadd.f32 %v317, %v363
    %365 = vmatmul.f32.gmra.mxu0 %v338
    %v366 = vpop.f32.mrf.mxu0
    %v367 = vadd.f32 %v322, %v366
    %368 = vmatmul.f32.gmra.mxu0 %v341
    %v369 = vpop.f32.mrf.mxu0
    %v370 = vadd.f32 %v327, %v369
    %371 = vmatmul.f32.gmra.mxu0 %v344
    %v372 = vpop.f32.mrf.mxu0
    %v373 = vadd.f32 %v332, %v372
    %374 = vdwg.mxu0
    %v375 = vmax.f32 %v364, 0.0
    %v376 = vmax.f32 %v367, 0.0
    %v377 = vmax.f32 %v370, 0.0
    %v378 = vmax.f32 %v373, 0.0
    %s379 = scalar_lea.vmem %s1, 128
    %v380 = vld [vmem:[%s379] sm:$0xff]
    %v381 = vld [vmem:[%s379 + $0x8] sm:$0xff]
    %v382 = vld [vmem:[%s379 + $0x10] sm:$0xff]
    %v383 = vld [vmem:[%s379 + $0x18] sm:$0xff]
    %s384 = scalar_lea.vmem %s2, 128
    %v385 = vld [vmem:[%s384] sm:$0xff]
    %v386 = vld [vmem:[%s384 + $0x8] sm:$0xff]
    %v387 = vld [vmem:[%s384 + $0x10] sm:$0xff]
    %v388 = vld [vmem:[%s384 + $0x18] sm:$0xff]
    %390 = vset.pattern.permute.xlu0 0
    %391 = vperm.xlu0 %390, %v385
    %v392 = vpop.permute.xlu0 %391
    %395 = vset.pattern.permute.xlu0 0
    %396 = vperm.xlu0 %395, %v386
    %v397 = vpop.permute.xlu0 %396
    %400 = vset.pattern.permute.xlu0 0
    %401 = vperm.xlu0 %400, %v387
    %v402 = vpop.permute.xlu0 %401
    %405 = vset.pattern.permute.xlu0 0
    %406 = vperm.xlu0 %405, %v388
    %v407 = vpop.permute.xlu0 %406
    %v410 = vsel %vm183, %v380, 0
    %v413 = vsel %vm183, %v381, 0
    %v416 = vsel %vm183, %v382, 0
    %v419 = vsel %vm183, %v383, 0
    %421 = vmatpush.msra.mxu0 0.0
    %422 = vmatpush.msra.mxu0 0.0
    %423 = vmatpush.msra.mxu0 0.0
    %424 = vmatpush.msra.mxu0 0.0
    %425 = vmatpush.msra.mxu0 0.0
    %426 = vmatpush.msra.mxu0 0.0
    %427 = vmatpush.msra.mxu0 0.0
    %428 = vmatpush.msra.mxu0 0.0
    %429 = vmatpush.msra.mxu0 0.0
    %430 = vmatpush.msra.mxu0 0.0
    %431 = vmatpush.msra.mxu0 0.0
    %432 = vmatpush.msra.mxu0 0.0
    %433 = vmatpush.msra.mxu0 %v378
    %434 = vmatpush.msra.mxu0 %v377
    %435 = vmatpush.msra.mxu0 %v376
    %436 = vmatpush.msra.mxu0 %v375
    %437 = vmatmul.f32.gmra.mxu0 %v410
    %v438 = vpop.f32.mrf.mxu0
    %v439 = vadd.f32 %v392, %v438
    %440 = vmatmul.f32.gmra.mxu0 %v413
    %v441 = vpop.f32.mrf.mxu0
    %v442 = vadd.f32 %v397, %v441
    %443 = vmatmul.f32.gmra.mxu0 %v416
    %v444 = vpop.f32.mrf.mxu0
    %v445 = vadd.f32 %v402, %v444
    %446 = vmatmul.f32.gmra.mxu0 %v419
    %v447 = vpop.f32.mrf.mxu0
    %v448 = vadd.f32 %v407, %v447
    %449 = vdwg.mxu0
    %v450 = vmax.f32 %v439, 0.0
    %v451 = vmax.f32 %v442, 0.0
    %v452 = vmax.f32 %v445, 0.0
    %v453 = vmax.f32 %v448, 0.0
    %s454 = scalar_lea.vmem %s1, 160
    %v455 = vld [vmem:[%s454] sm:$0xff]
    %v456 = vld [vmem:[%s454 + $0x8] sm:$0xff]
    %v457 = vld [vmem:[%s454 + $0x10] sm:$0xff]
    %v458 = vld [vmem:[%s454 + $0x18] sm:$0xff]
    %s459 = scalar_lea.vmem %s2, 160
    %v460 = vld [vmem:[%s459] sm:$0xff]
    %v461 = vld [vmem:[%s459 + $0x8] sm:$0xff]
    %v462 = vld [vmem:[%s459 + $0x10] sm:$0xff]
    %v463 = vld [vmem:[%s459 + $0x18] sm:$0xff]
    %465 = vset.pattern.permute.xlu0 0
    %466 = vperm.xlu0 %465, %v460
    %v467 = vpop.permute.xlu0 %466
    %470 = vset.pattern.permute.xlu0 0
    %471 = vperm.xlu0 %470, %v461
    %v472 = vpop.permute.xlu0 %471
    %475 = vset.pattern.permute.xlu0 0
    %476 = vperm.xlu0 %475, %v462
    %v477 = vpop.permute.xlu0 %476
    %480 = vset.pattern.permute.xlu0 0
    %481 = vperm.xlu0 %480, %v463
    %v482 = vpop.permute.xlu0 %481
    %v485 = vsel %vm183, %v455, 0
    %v488 = vsel %vm183, %v456, 0
    %v491 = vsel %vm183, %v457, 0
    %v494 = vsel %vm183, %v458, 0
    %496 = vmatpush.msra.mxu0 0.0
    %497 = vmatpush.msra.mxu0 0.0
    %498 = vmatpush.msra.mxu0 0.0
    %499 = vmatpush.msra.mxu0 0.0
    %500 = vmatpush.msra.mxu0 0.0
    %501 = vmatpush.msra.mxu0 0.0
    %502 = vmatpush.msra.mxu0 0.0
    %503 = vmatpush.msra.mxu0 0.0
    %504 = vmatpush.msra.mxu0 0.0
    %505 = vmatpush.msra.mxu0 0.0
    %506 = vmatpush.msra.mxu0 0.0
    %507 = vmatpush.msra.mxu0 0.0
    %508 = vmatpush.msra.mxu0 %v453
    %509 = vmatpush.msra.mxu0 %v452
    %510 = vmatpush.msra.mxu0 %v451
    %511 = vmatpush.msra.mxu0 %v450
    %512 = vmatmul.f32.gmra.mxu0 %v485
    %v513 = vpop.f32.mrf.mxu0
    %v514 = vadd.f32 %v467, %v513
    %515 = vmatmul.f32.gmra.mxu0 %v488
    %v516 = vpop.f32.mrf.mxu0
    %v517 = vadd.f32 %v472, %v516
    %518 = vmatmul.f32.gmra.mxu0 %v491
    %v519 = vpop.f32.mrf.mxu0
    %v520 = vadd.f32 %v477, %v519
    %521 = vmatmul.f32.gmra.mxu0 %v494
    %v522 = vpop.f32.mrf.mxu0
    %v523 = vadd.f32 %v482, %v522
    %524 = vdwg.mxu0
    %v525 = vmax.f32 %v514, 0.0
    %v526 = vmax.f32 %v517, 0.0
    %v527 = vmax.f32 %v520, 0.0
    %v528 = vmax.f32 %v523, 0.0
    %s529 = scalar_lea.vmem %s1, 192
    %v530 = vld [vmem:[%s529] sm:$0xff]
    %v531 = vld [vmem:[%s529 + $0x8] sm:$0xff]
    %v532 = vld [vmem:[%s529 + $0x10] sm:$0xff]
    %v533 = vld [vmem:[%s529 + $0x18] sm:$0xff]
    %s534 = scalar_lea.vmem %s2, 192
    %v535 = vld [vmem:[%s534] sm:$0xff]
    %v536 = vld [vmem:[%s534 + $0x8] sm:$0xff]
    %v537 = vld [vmem:[%s534 + $0x10] sm:$0xff]
    %v538 = vld [vmem:[%s534 + $0x18] sm:$0xff]
    %540 = vset.pattern.permute.xlu0 0
    %541 = vperm.xlu0 %540, %v535
    %v542 = vpop.permute.xlu0 %541
    %545 = vset.pattern.permute.xlu0 0
    %546 = vperm.xlu0 %545, %v536
    %v547 = vpop.permute.xlu0 %546
    %550 = vset.pattern.permute.xlu0 0
    %551 = vperm.xlu0 %550, %v537
    %v552 = vpop.permute.xlu0 %551
    %555 = vset.pattern.permute.xlu0 0
    %556 = vperm.xlu0 %555, %v538
    %v557 = vpop.permute.xlu0 %556
    %v560 = vsel %vm183, %v530, 0
    %v563 = vsel %vm183, %v531, 0
    %v566 = vsel %vm183, %v532, 0
    %v569 = vsel %vm183, %v533, 0
    %571 = vmatpush.msra.mxu0 0.0
    %572 = vmatpush.msra.mxu0 0.0
    %573 = vmatpush.msra.mxu0 0.0
    %574 = vmatpush.msra.mxu0 0.0
    %575 = vmatpush.msra.mxu0 0.0
    %576 = vmatpush.msra.mxu0 0.0
    %577 = vmatpush.msra.mxu0 0.0
    %578 = vmatpush.msra.mxu0 0.0
    %579 = vmatpush.msra.mxu0 0.0
    %580 = vmatpush.msra.mxu0 0.0
    %581 = vmatpush.msra.mxu0 0.0
    %582 = vmatpush.msra.mxu0 0.0
    %583 = vmatpush.msra.mxu0 %v528
    %584 = vmatpush.msra.mxu0 %v527
    %585 = vmatpush.msra.mxu0 %v526
    %586 = vmatpush.msra.mxu0 %v525
    %587 = vmatmul.f32.gmra.mxu0 %v560
    %v588 = vpop.f32.mrf.mxu0
    %v589 = vadd.f32 %v542, %v588
    %590 = vmatmul.f32.gmra.mxu0 %v563
    %v591 = vpop.f32.mrf.mxu0
    %v592 = vadd.f32 %v547, %v591
    %593 = vmatmul.f32.gmra.mxu0 %v566
    %v594 = vpop.f32.mrf.mxu0
    %v595 = vadd.f32 %v552, %v594
    %596 = vmatmul.f32.gmra.mxu0 %v569
    %v597 = vpop.f32.mrf.mxu0
    %v598 = vadd.f32 %v557, %v597
    %599 = vdwg.mxu0
    %v600 = vtanh.pop %v589
    %v601 = vtanh.pop %v592
    %v602 = vtanh.pop %v595
    %v603 = vtanh.pop %v598
    %s604 = scalar_lea.vmem %s1, 224
    %v605 = vld [vmem:[%s604] sm:$0xff]
    %v606 = vld [vmem:[%s604 + $0x8] sm:$0xff]
    %v607 = vld [vmem:[%s604 + $0x10] sm:$0xff]
    %v608 = vld [vmem:[%s604 + $0x18] sm:$0xff]
    %s609 = scalar_lea.vmem %s2, 224
    %v610 = vld [vmem:[%s609] sm:$0xff]
    %v611 = vld [vmem:[%s609 + $0x8] sm:$0xff]
    %v612 = vld [vmem:[%s609 + $0x10] sm:$0xff]
    %v613 = vld [vmem:[%s609 + $0x18] sm:$0xff]
    %615 = vset.pattern.permute.xlu0 0
    %616 = vperm.xlu0 %615, %v610
    %v617 = vpop.permute.xlu0 %616
    %620 = vset.pattern.permute.xlu0 0
    %621 = vperm.xlu0 %620, %v611
    %v622 = vpop.permute.xlu0 %621
    %624 = vset.pattern.permute.xlu0 0
    %625 = vperm.xlu0 %624, %v612
    %v626 = vpop.permute.xlu0 %625
    %628 = vset.pattern.permute.xlu0 0
    %629 = vperm.xlu0 %628, %v613
    %v630 = vpop.permute.xlu0 %629
    %v632 = vsel %vm183, %v605, 0
    %v635 = vsel %vm183, %v606, 0
    %v638 = vsel %vm183, %v607, 0
    %v641 = vsel %vm183, %v608, 0
    %643 = vmatpush.msra.mxu0 0.0
    %644 = vmatpush.msra.mxu0 0.0
    %645 = vmatpush.msra.mxu0 0.0
    %646 = vmatpush.msra.mxu0 0.0
    %647 = vmatpush.msra.mxu0 0.0
    %648 = vmatpush.msra.mxu0 0.0
    %649 = vmatpush.msra.mxu0 0.0
    %650 = vmatpush.msra.mxu0 0.0
    %651 = vmatpush.msra.mxu0 0.0
    %652 = vmatpush.msra.mxu0 0.0
    %653 = vmatpush.msra.mxu0 0.0
    %654 = vmatpush.msra.mxu0 0.0
    %655 = vmatpush.msra.mxu0 %v603
    %656 = vmatpush.msra.mxu0 %v602
    %657 = vmatpush.msra.mxu0 %v601
    %658 = vmatpush.msra.mxu0 %v600
    %659 = vmatmul.f32.gmra.mxu0 %v632
    %v660 = vpop.f32.mrf.mxu0
    %v661 = vadd.f32 %v617, %v660
    %662 = vmatmul.f32.gmra.mxu0 %v635
    %v663 = vpop.f32.mrf.mxu0
    %664 = vmatmul.f32.gmra.mxu0 %v638
    %v665 = vpop.f32.mrf.mxu0
    %666 = vmatmul.f32.gmra.mxu0 %v641
    %v667 = vpop.f32.mrf.mxu0
    %668 = vdwg.mxu0
    %669 = vst [vmem:[#allocation2] sm:$0xf] %v661
    // Predicated region
    $region14: #{tpu_custom_call.1} parent=1 // pred_check
      _
    $region15: #{tpu_custom_call.1} parent=1 // pred_check_branch
      %671 = sbr.rel (0) target = $region17
    $region16: #{tpu_custom_call.1} parent=1 // pred_region
      %673 = vsyncadd [#allocation3], 0
      %s675 = sshll.u32 [#allocation2], 4
      %s676 = int_to_ptr.vmem [resolvable:$true] %s675
      %s677 = sshll.u32 %s3, 4
      %s678 = int_to_ptr.hbm [resolvable:$true] %s677
      %680 = dma.vmem_to_hbm [thread:$0]  %s676, 64, %s678, [#allocation3]
    $region17: #{tpu_custom_call.1} parent=1 // pred_fallthru
      _
    // Predicated region
    $region18: #{tpu_custom_call.1} parent=1 // pred_check
      _
    $region19: #{tpu_custom_call.1} parent=1 // pred_check_branch
      %682 = sbr.rel (0) target = $region21
    $region20: #{tpu_custom_call.1} parent=1 // pred_region
      %684 = dma.done [#allocation3], 64
    $region21: #{tpu_custom_call.1} parent=1 // pred_fallthru
      _
    %685 = vsyncpa [#allocation3], 1

</llo_original>
